<compile_context>
chip_gen: v5e
topology: v5e:2x2
jax: 0.10.0
libtpu: 0.0.40
codegen_flags: <defaults>
</compile_context>

<pallas_src>
import functools
import math

import jax
import jax.numpy as jnp
from jax.experimental import pallas as pl
from jax.experimental.pallas import tpu as pltpu


# ----------------------------------------------------------------------------
# Helpers used inside kernels
# ----------------------------------------------------------------------------

def _layernorm(x, g, b, eps=1e-6):
    # x: (S, D) f32; g, b: (1, D) f32  (timm/MAE ViT uses eps=1e-6)
    mu = jnp.mean(x, axis=-1, keepdims=True)
    xc = x - mu
    var = jnp.mean(xc * xc, axis=-1, keepdims=True)
    return xc * jax.lax.rsqrt(var + eps) * g + b


# ----------------------------------------------------------------------------
# Pallas kernels
# ----------------------------------------------------------------------------

def _patch_embed_kernel(x_ref, w_ref, b_ref, o_ref):
    # out = x @ W + b ; x, W in bf16, accumulate f32.
    o_ref[...] = (
        jnp.dot(x_ref[...], w_ref[...], preferred_element_type=jnp.float32)
        + b_ref[...]
    )


def _encoder_kernel(tok_ref,
                    ln1g_ref, ln1b_ref, wqkv_ref, bqkv_ref,
                    wproj_ref, bproj_ref, ln2g_ref, ln2b_ref,
                    w1_ref, b1_ref, w2_ref, b2_ref,
                    normg_ref, normb_ref, kbias_ref,
                    out_ref, *, num_heads, use_mask):
    """Fused ViT trunk.  grid=(B//Bt, depth); tokens resident in out_ref.

    Each depth step loads one layer's weights (double-buffered by BlockSpec)
    and applies them to Bt batch elements, amortizing the weight DMA.
    1/sqrt(dh) is pre-folded into the Q third of w_qkv / b_qkv.
    """
    d = pl.program_id(1)
    depth = pl.num_programs(1)
    bt, S, D = tok_ref.shape
    H = num_heads
    dh = D // H
    bf16 = jnp.bfloat16

    @pl.when(d == 0)
    def _():
        out_ref[...] = tok_ref[...]      # load tokens once per batch group

    kb = kbias_ref[...] if use_mask else None      # (1, S) additive key bias

    for b in range(bt):                  # static loop: weights reused for Bt elts
        x = out_ref[b]                   # (S, D) f32, VMEM-resident accumulator

        # ---- attention ------------------------------------------------------
        xn = _layernorm(x, ln1g_ref[0], ln1b_ref[0])
        qkv = (jnp.dot(xn.astype(bf16), wqkv_ref[0],
                       preferred_element_type=jnp.float32)
               + bqkv_ref[0])                                  # (S, 3D) f32

        heads = []
        for h in range(H):
            c0 = h * dh
            qh = qkv[:, c0:c0 + dh].astype(bf16)               # (S, dh)
            kh = qkv[:, D + c0:D + c0 + dh].astype(bf16)       # (S, dh)
            vh = qkv[:, 2 * D + c0:2 * D + c0 + dh].astype(bf16)
            s = jnp.dot(qh, kh.T, preferred_element_type=jnp.float32)  # (S, S)
            if use_mask:
                s = s + kb                                     # mask padded keys
            s = s - jnp.max(s, axis=-1, keepdims=True)
            e = jnp.exp(s)
            p = e * pl.reciprocal(jnp.sum(e, axis=-1, keepdims=True),
                                  approx=True)
            heads.append(jnp.dot(p.astype(bf16), vh,
                                 preferred_element_type=jnp.float32))  # (S, dh)
        ctx = jnp.concatenate(heads, axis=-1)                  # (S, D)

        attn = (jnp.dot(ctx.astype(bf16), wproj_ref[0],
                        preferred_element_type=jnp.float32)
                + bproj_ref[0])
        x = x + attn

        # ---- MLP --------------------------------------------------------------
        xn = _layernorm(x, ln2g_ref[0], ln2b_ref[0])
        h1 = (jnp.dot(xn.astype(bf16), w1_ref[0],
                      preferred_element_type=jnp.float32)
              + b1_ref[0])
        # exact GELU (erf), matching torch.nn.GELU default — keep f32.
        # (tanh-approx GELU on the EUP would be faster on v6e/v7x but changes
        #  semantics vs the PyTorch reference.)
        h1 = 0.5 * h1 * (1.0 + jax.lax.erf(h1 * 0.7071067811865476))
        h2 = (jnp.dot(h1.astype(bf16), w2_ref[0],
                      preferred_element_type=jnp.float32)
              + b2_ref[0])
        out_ref[b] = x + h2

    # ---- final LayerNorm folded into the last depth step -----------------------
    @pl.when(d == depth - 1)
    def _():
        for b in range(bt):
            out_ref[b] = _layernorm(out_ref[b], normg_ref[...], normb_ref[...])


# ----------------------------------------------------------------------------
# Wrappers
# ----------------------------------------------------------------------------

def patch_embed(x, w_bf16, b, patch):
    """x: (B, C, H, W) NCHW.  w: (C*p*p, D) bf16.  b: (1, D) f32 -> (B, N, D).

    Equivalent to Conv2d(C, D, kernel=patch, stride=patch) + flatten/transpose
    (channel-major flattening of each patch, matching timm PatchEmbed)."""
    B, C, H, W = x.shape
    p = patch
    gh, gw = H // p, W // p
    M = B * gh * gw
    K = C * p * p
    D = w_bf16.shape[1]

    patches = x.reshape(B, C, gh, p, gw, p).transpose(0, 2, 4, 1, 3, 5)
    patches = patches.reshape(M, K)

    # HBM-bound matmul: 512-row tiles sit near the measured HBM-roofline knee
    # (~85%) while costing only a few MB of VMEM even on v7x.
    tm = 512
    if M < tm:
        tm = ((M + 7) // 8) * 8          # sublane-aligned single tile
    n_tiles = (M + tm - 1) // tm
    M_pad = n_tiles * tm
    if M_pad != M:
        patches = jnp.pad(patches, ((0, M_pad - M), (0, 0)))
    patches = patches.astype(jnp.bfloat16)

    out = pl.pallas_call(
        _patch_embed_kernel,
        grid=(n_tiles,),
        in_specs=[
            pl.BlockSpec((tm, K), lambda i: (i, 0)),
            pl.BlockSpec((K, D), lambda i: (0, 0)),
            pl.BlockSpec((1, D), lambda i: (0, 0)),
        ],
        out_specs=pl.BlockSpec((tm, D), lambda i: (i, 0)),
        out_shape=jax.ShapeDtypeStruct((M_pad, D), jnp.float32),
        compiler_params=pltpu.CompilerParams(
            dimension_semantics=("parallel",)),
    )(patches, w_bf16, b)
    return out[:M].reshape(B, gh * gw, D)


def encoder_trunk(tokens, blk, norm_g, norm_b, kbias, *, num_heads, use_mask):
    """tokens: (B, S_pad, D) f32.  blk: dict of depth-stacked block params."""
    B, S_pad, D = tokens.shape
    depth = blk["w_qkv"].shape[0]
    mlp_dim = blk["w_fc1"].shape[-1]

    # Batch elements processed per weight load (amortizes per-layer weight DMA).
    bt = next(g for g in (4, 3, 2, 1) if B % g == 0)

    def depth_spec(shape):
        nd = len(shape)
        return pl.BlockSpec((1,) + tuple(shape[1:]),
                            lambda b, d, _n=nd: (d,) + (0,) * (_n - 1))

    def full_spec(shape):
        nd = len(shape)
        return pl.BlockSpec(tuple(shape), lambda b, d, _n=nd: (0,) * _n)

    weights = [blk[k] for k in (
        "ln1_g", "ln1_b", "w_qkv", "b_qkv", "w_proj", "b_proj",
        "ln2_g", "ln2_b", "w_fc1", "b_fc1", "w_fc2", "b_fc2")]

    in_specs = [pl.BlockSpec((bt, S_pad, D), lambda b, d: (b, 0, 0))]
    in_specs += [depth_spec(w.shape) for w in weights]
    in_specs += [full_spec(norm_g.shape), full_spec(norm_b.shape),
                 full_spec(kbias.shape)]

    # Explicit VMEM budget: double-buffered per-layer weights + resident token
    # slabs + f32 intermediates, clamped against the device's capacity.
    per_step_w = sum(int(math.prod(w.shape[1:])) * w.dtype.itemsize
                     for w in weights)
    resident = 2 * bt * S_pad * D * 4                       # tok block + out block
    interm = bt * S_pad * (3 * D + mlp_dim + 2 * D) * 4     # qkv / h1 / residual
    interm += num_heads * S_pad * S_pad * 4                 # score/softmax slabs
    est = 2 * per_step_w + resident + interm + (4 << 20)
    try:
        cap = int(pltpu.get_tpu_info().vmem_capacity_bytes)
    except Exception:
        cap = 64 << 20
    vmem_limit = int(min(max(est, 16 << 20), int(cap * 0.8)))

    # TODO(synk): on v7x (64 MiB VMEM/TC) at ViT-B sizes, split the depth step
    # (attention half vs MLP half) or K-tile w_fc1/w_fc2 via pltpu.emit_pipeline
    # so double-buffered weights + intermediates keep fitting.
    # TODO(synk): for B==1 single-stream inference on v7x, add a core-parallel
    # split over heads or S so the second TensorCore is not idle.
    return pl.pallas_call(
        functools.partial(_encoder_kernel, num_heads=num_heads,
                          use_mask=use_mask),
        grid=(B // bt, depth),
        in_specs=in_specs,
        out_specs=pl.BlockSpec((bt, S_pad, D), lambda b, d: (b, 0, 0)),
        out_shape=jax.ShapeDtypeStruct((B, S_pad, D), jnp.float32),
        compiler_params=pltpu.CompilerParams(
            dimension_semantics=("parallel", "arbitrary"),
            vmem_limit_bytes=vmem_limit),
    )(tokens, *weights, norm_g, norm_b, kbias)


def mae_encode_forward(x_img, z_img, params, *, patch, num_heads):
    """Pallas implementation of MAEEncode.forward."""
    x = patch_embed(x_img, params["pe_w"], params["pe_b"], patch)      # (B,Nx,D)
    z = patch_embed(z_img, params["zpe_w"], params["zpe_b"], patch)    # (B,Nz,D)

    x = x + params["pos_embed"][:, 1:, :]
    z = z + params["z_pos_embed"][:, 0:, :]
    len_z = z.shape[1]

    cls = params["cls_token"] + params["pos_embed"][:, :1, :]          # (1,1,D)
    cls = jnp.broadcast_to(cls, (x.shape[0], 1, cls.shape[-1]))

    tokens = jnp.concatenate([cls, z, x], axis=1)                      # (B,S,D)
    B, S_real, D = tokens.shape
    # Pad S to a multiple of 16 (bf16 sublane pack).  Padding all the way to a
    # multiple of 128 would make the (S,S) score slabs lane-dense — worth
    # measuring at real ViT-B sequence lengths.
    S_pad = ((S_real + 15) // 16) * 16
    if S_pad != S_real:
        tokens = jnp.pad(tokens, ((0, 0), (0, S_pad - S_real), (0, 0)))

    use_mask = S_pad != S_real
    kidx = jnp.arange(S_pad)
    kbias = jnp.where(kidx < S_real, 0.0, -1e30).astype(jnp.float32)[None, :]

    tokens = encoder_trunk(tokens, params["blocks"],
                           params["norm_g"], params["norm_b"], kbias,
                           num_heads=num_heads, use_mask=use_mask)

    z_out = tokens[:, 1:1 + len_z]
    x_out = tokens[:, 1 + len_z:S_real]
    return x_out, z_out


# ----------------------------------------------------------------------------
# Deterministic parameter construction (synthetic, no checkpoint load)
# ----------------------------------------------------------------------------

def make_params(key, *, in_chans, patch, n_x, n_z, dim, depth, num_heads, mlp_dim):
    keys = jax.random.split(key, 16)
    P = in_chans * patch * patch
    f32, bf16 = jnp.float32, jnp.bfloat16

    def normal(k, shape, std=0.02):
        return (std * jax.random.normal(k, shape)).astype(f32)

    # Fold the attention 1/sqrt(dh) query scale into the Q third of w_qkv /
    # b_qkv once here, so the kernel never multiplies qkv[:, :D] per layer.
    qscale = 1.0 / float(dim // num_heads) ** 0.5
    w_qkv = normal(keys[5], (depth, dim, 3 * dim))
    w_qkv = w_qkv.at[:, :, :dim].multiply(qscale)
    b_qkv = jnp.zeros((depth, 1, 3 * dim), f32)          # q-third scale is a no-op on zeros

    params = {
        # conv weight (D, C, p, p) stored pre-flattened/transposed as (C*p*p, D)
        "pe_w": normal(keys[0], (P, dim)).astype(bf16),
        "pe_b": jnp.zeros((1, dim), f32),
        "zpe_w": normal(keys[1], (P, dim)).astype(bf16),
        "zpe_b": jnp.zeros((1, dim), f32),
        "pos_embed": normal(keys[2], (1, n_x + 1, dim)),
        "z_pos_embed": normal(keys[3], (1, n_z, dim)),
        "cls_token": normal(keys[4], (1, 1, dim)),
        "norm_g": jnp.ones((1, dim), f32),
        "norm_b": jnp.zeros((1, dim), f32),
        # per-block params stacked along a leading depth axis (streamed by the
        # fused kernel's BlockSpec pipeline, matmul weights in bf16)
        "blocks": {
            "ln1_g": jnp.ones((depth, 1, dim), f32),
            "ln1_b": jnp.zeros((depth, 1, dim), f32),
            "w_qkv": w_qkv.astype(bf16),
            "b_qkv": b_qkv,
            "w_proj": normal(keys[6], (depth, dim, dim)).astype(bf16),
            "b_proj": jnp.zeros((depth, 1, dim), f32),
            "ln2_g": jnp.ones((depth, 1, dim), f32),
            "ln2_b": jnp.zeros((depth, 1, dim), f32),
            "w_fc1": normal(keys[7], (depth, dim, mlp_dim)).astype(bf16),
            "b_fc1": jnp.zeros((depth, 1, mlp_dim), f32),
            "w_fc2": normal(keys[8], (depth, mlp_dim, dim)).astype(bf16),
            "b_fc2": jnp.zeros((depth, 1, dim), f32),
        },
    }
    return params


# ----------------------------------------------------------------------------

if __name__ == "__main__":
    # Small shapes consistent with the module: search image x, template z,
    # shared ViT trunk, cls token + z tokens + x tokens sequence.
    B, C = 2, 3
    PATCH = 4
    X_HW, Z_HW = 16, 8           # search / template image sizes
    DIM, DEPTH, HEADS = 32, 2, 4
    MLP_DIM = 4 * DIM
    N_X = (X_HW // PATCH) ** 2   # 16
    N_Z = (Z_HW // PATCH) ** 2   # 4

    key = jax.random.PRNGKey(0)
    k_param, k_x, k_z = jax.random.split(key, 3)

    params = make_params(k_param, in_chans=C, patch=PATCH, n_x=N_X, n_z=N_Z,
                         dim=DIM, depth=DEPTH, num_heads=HEADS, mlp_dim=MLP_DIM)

    x_img = jax.random.normal(k_x, (B, C, X_HW, X_HW), dtype=jnp.float32)  # NCHW
    z_img = jax.random.normal(k_z, (B, C, Z_HW, Z_HW), dtype=jnp.float32)  # NCHW

    x_out, z_out = mae_encode_forward(x_img, z_img, params,
                                      patch=PATCH, num_heads=HEADS)
    jax.block_until_ready((x_out, z_out))

    assert x_out.shape == (B, N_X, DIM) and z_out.shape == (B, N_Z, DIM)
    assert bool(jnp.all(jnp.isfinite(x_out))) and bool(jnp.all(jnp.isfinite(z_out)))
    print("KERNEL_OK")
</pallas_src>

<mosaic_0001>
module attributes {stable_mosaic.version = 11 : i64} {
  func.func @_patch_embed_kernel(%arg0: i32, %arg1: memref<32x48xbf16, #tpu.memory_space<vmem>>, %arg2: memref<48x32xbf16, #tpu.memory_space<vmem>>, %arg3: memref<1x32xf32, #tpu.memory_space<vmem>>, %arg4: memref<32x32xf32, #tpu.memory_space<vmem>>) attributes {dimension_semantics = [#tpu.dimension_semantics<parallel>], iteration_bounds = array<i64: 1>, scalar_prefetch = 0 : i64, scratch_operands = 0 : i64, tpu.core_type = #tpu.core_type<tc>, window_params = [{transform_indices = @transform_0, window_bounds = array<i64: 32, 48>}, {pipeline_mode = #tpu.pipeline_mode<synchronous>, transform_indices = @transform_1, window_bounds = array<i64: 48, 32>}, {pipeline_mode = #tpu.pipeline_mode<synchronous>, transform_indices = @transform_2, window_bounds = array<i64: 1, 32>}, {transform_indices = @transform_3, window_bounds = array<i64: 32, 32>}]} {
    %c0 = arith.constant 0 : index
    %c0_0 = arith.constant 0 : index
    %0 = vector.load %arg1[%c0, %c0_0] : memref<32x48xbf16, #tpu.memory_space<vmem>>, vector<32x48xbf16>
    %c0_1 = arith.constant 0 : index
    %c0_2 = arith.constant 0 : index
    %1 = vector.load %arg2[%c0_1, %c0_2] : memref<48x32xbf16, #tpu.memory_space<vmem>>, vector<48x32xbf16>
    %cst = arith.constant dense<0.000000e+00> : vector<32x32xf32>
    %2 = tpu.matmul %0, %1, %cst {dimension_numbers = #tpu.dot_dimension_numbers<[1], [0], [0], [1], [0, 0, 1, 1], [], []>} : vector<32x48xbf16>, vector<48x32xbf16>, vector<32x32xf32> -> vector<32x32xf32>
    %c0_3 = arith.constant 0 : index
    %c0_4 = arith.constant 0 : index
    %3 = vector.load %arg3[%c0_3, %c0_4] : memref<1x32xf32, #tpu.memory_space<vmem>>, vector<1x32xf32>
    %4 = vector.broadcast %3 : vector<1x32xf32> to vector<32x32xf32>
    %5 = arith.addf %2, %4 : vector<32x32xf32>
    %c0_5 = arith.constant 0 : index
    %c0_6 = arith.constant 0 : index
    %6 = vector.load %arg4[%c0_5, %c0_6] : memref<32x32xf32, #tpu.memory_space<vmem>>, vector<32x32xf32>
    tpu.vector_store %arg4[%c0_5, %c0_6], %5 {strides = array<i32>} : memref<32x32xf32, #tpu.memory_space<vmem>>, vector<32x32xf32>,
    return
  }
  func.func @transform_0(%arg0: i32) -> (i32, i32) {
    %c0_i32 = arith.constant 0 : i32
    %c0_i32_0 = arith.constant 0 : i32
    return %arg0, %c0_i32 : i32, i32
  }
  func.func @transform_1(%arg0: i32) -> (i32, i32) {
    %c0_i32 = arith.constant 0 : i32
    %c0_i32_0 = arith.constant 0 : i32
    %c0_i32_1 = arith.constant 0 : i32
    return %c0_i32, %c0_i32_0 : i32, i32
  }
  func.func @transform_2(%arg0: i32) -> (i32, i32) {
    %c0_i32 = arith.constant 0 : i32
    %c0_i32_0 = arith.constant 0 : i32
    %c0_i32_1 = arith.constant 0 : i32
    return %c0_i32, %c0_i32_0 : i32, i32
  }
  func.func @transform_3(%arg0: i32) -> (i32, i32) {
    %c0_i32 = arith.constant 0 : i32
    %c0_i32_0 = arith.constant 0 : i32
    return %arg0, %c0_i32 : i32, i32
  }
}

</mosaic_0001>

<llo_original>
// kernel: tpu_custom_call.1
$region0: #{tpu_custom_call.1}
  #allocation0 [shape = 'u32[]', space=smem, size = 0x4, offset = 0x4, fixed_abs, tag = 'smem constant byte address 0x4 - core index']
  #allocation1 [shape = 'u32[72,128]{1,0:T(1,128)}', space=vmem, size = 0x9000, scoped, tag = 'internal scratch']
  %s0 = inlined_call_operand.vmem [shape: bf16[32,48], index: 0, kind: input, shape index: {}]
  %s1 = inlined_call_operand.vmem [shape: bf16[48,32], index: 1, kind: input, shape index: {}]
  %s2 = inlined_call_operand.vmem [shape: f32[1,32], index: 2, kind: input, shape index: {}]
  %s3 = inlined_call_operand.hbm [shape: f32[32,32], index: 3, kind: output, shape index: {}]
  %s4 = sld [smem:[#allocation0]]
  $region22: #{tpu_custom_call.1} parent=0
    _
  %s6 = ssub.s32 1, %s4
  %s7 = scalar_select 0, %s6, %s4
  $region1: #{tpu_custom_call.1} parent=0
    #allocation2 [shape = 'u8[16384]{0}', space=vmem, size = 0x4000, scoped, tag = 'output window, operand 0, single buffered']
    #allocation3 [shape = 's32[1]{0}', space=sflag, size = 0x4, scoped, tag = 'scoped memory for tpu_custom_call.1']
    %8 = vsyncpa [#allocation3], 0
    // Predicated region
    $region2: #{tpu_custom_call.1} parent=1 // pred_check
      _
    $region3: #{tpu_custom_call.1} parent=1 // pred_check_branch
      %10 = sbr.rel (0) target = $region5
    $region4: #{tpu_custom_call.1} parent=1 // pred_region
      _
    $region5: #{tpu_custom_call.1} parent=1 // pred_fallthru
      _
    // Predicated region
    $region6: #{tpu_custom_call.1} parent=1 // pred_check
      _
    $region7: #{tpu_custom_call.1} parent=1 // pred_check_branch
      %12 = sbr.rel (0) target = $region9
    $region8: #{tpu_custom_call.1} parent=1 // pred_region
      _
    $region9: #{tpu_custom_call.1} parent=1 // pred_fallthru
      _
    // Predicated region
    $region10: #{tpu_custom_call.1} parent=1 // pred_check
      _
    $region11: #{tpu_custom_call.1} parent=1 // pred_check_branch
      %14 = sbr.rel (0) target = $region13
    $region12: #{tpu_custom_call.1} parent=1 // pred_region
      _
    $region13: #{tpu_custom_call.1} parent=1 // pred_fallthru
      _
    %v16 = vld [vmem:[%s0] sm:$0xf]
    %v17 = vld [vmem:[%s0 + $0x4] sm:$0xf]
    %v18 = vld [vmem:[%s0 + $0x8] sm:$0xf]
    %v19 = vld [vmem:[%s0 + $0xc] sm:$0xf]
    %v20 = vld [vmem:[%s1] sm:$0xf]
    %v21 = vld [vmem:[%s1 + $0x4] sm:$0xf]
    %v22 = vld [vmem:[%s1 + $0x8] sm:$0xf]
    %v23 = vld [vmem:[%s1 + $0xc] sm:$0xf]
    %v24 = vld [vmem:[%s1 + $0x10] sm:$0xf]
    %v25 = vld [vmem:[%s1 + $0x14] sm:$0xf]
    %v26 = vld [vmem:[%s2] sm:$0x1]
    %v28 = vperm.slane %v26, 0
    %v34 = vunpack.c.l.b16 %v16
    %v35 = vunpack.c.l.b16 %v17
    %v36 = vunpack.c.l.b16 %v18
    %v37 = vunpack.c.l.b16 %v19
    %v38 = vpack.c.b16 %v35, %v34
    %v39 = vpack.c.b16 %v37, %v36
    %v46 = vunpack.c.l.b16 %v20
    %v47 = vunpack.c.l.b16 %v21
    %v48 = vunpack.c.l.b16 %v22
    %v49 = vunpack.c.l.b16 %v23
    %v50 = vunpack.c.l.b16 %v24
    %v51 = vunpack.c.l.b16 %v25
    %v52 = vpack.c.b16 %v47, %v46
    %v53 = vpack.c.b16 %v49, %v48
    %v54 = vpack.c.b16 %v51, %v50
    %vm58 = vcmask 392192
    %v60 = vsel %vm58, %v38, 0
    %v63 = vsel %vm58, %v39, 0
    %65 = vmatpush.bf16.msra.mxu0 0
    %66 = vmatpush.bf16.msra.mxu0 0
    %67 = vmatpush.bf16.msra.mxu0 0
    %68 = vmatpush.bf16.msra.mxu0 0
    %69 = vmatpush.bf16.msra.mxu0 0
    %70 = vmatpush.bf16.msra.mxu0 %v54
    %71 = vmatpush.bf16.msra.mxu0 %v53
    %72 = vmatpush.bf16.msra.mxu0 %v52
    %73 = vmatmul.bf16.gmra.mxu0 %v60
    %v74 = vpop.f32.mrf.mxu0
    %v75 = vadd.f32 %v28, %v74
    %v76 = vpop.f32.mrf.mxu0
    %v77 = vadd.f32 %v28, %v76
    %78 = vmatmul.bf16.gmra.mxu0 %v63
    %v79 = vpop.f32.mrf.mxu0
    %v80 = vadd.f32 %v28, %v79
    %v81 = vpop.f32.mrf.mxu0
    %v82 = vadd.f32 %v28, %v81
    %83 = vdwg.mxu0
    %vm84 = vcmask 261120
    %85 = vst.msk [vmem:[#allocation2] sm:$0xff] %vm84, %v75
    %86 = vst.msk [vmem:[#allocation2 + $0x8] sm:$0xff] %vm84, %v77
    %87 = vst.msk [vmem:[#allocation2 + $0x10] sm:$0xff] %vm84, %v80
    %88 = vst.msk [vmem:[#allocation2 + $0x18] sm:$0xff] %vm84, %v82
    // Predicated region
    $region14: #{tpu_custom_call.1} parent=1 // pred_check
      _
    $region15: #{tpu_custom_call.1} parent=1 // pred_check_branch
      %90 = sbr.rel (0) target = $region17
    $region16: #{tpu_custom_call.1} parent=1 // pred_region
      %92 = vsyncadd [#allocation3], 0
      %s93 = sshll.u32 [#allocation2], 4
      %s94 = int_to_ptr.vmem [resolvable:$true] %s93
      %s95 = sshll.u32 %s3, 4
      %s96 = int_to_ptr.hbm [resolvable:$true] %s95
      %101 = dma.vmem_to_hbm [thread:$0]  %s94, 512, %s96, [#allocation3], 128, 128, 8
    $region17: #{tpu_custom_call.1} parent=1 // pred_fallthru
      _
    // Predicated region
    $region18: #{tpu_custom_call.1} parent=1 // pred_check
      _
    $region19: #{tpu_custom_call.1} parent=1 // pred_check_branch
      %103 = sbr.rel (0) target = $region21
    $region20: #{tpu_custom_call.1} parent=1 // pred_region
      %105 = dma.done [#allocation3], 512
    $region21: #{tpu_custom_call.1} parent=1 // pred_fallthru
      _
    %106 = vsyncpa [#allocation3], 1

</llo_original>
